<compile_context>
chip_gen: v6e
topology: v6e:2x2x1
jax: 0.10.0
libtpu: 0.0.40
codegen_flags: <defaults>
</compile_context>

<pallas_src>
import functools

import jax
import jax.numpy as jnp
from jax.experimental import pallas as pl
from jax.experimental.pallas import tpu as pltpu

EPS = 1e-5
NEG_SLOPE = 0.2


def _round_up(x, m):
    return (x + m - 1) // m * m


# ---------------------------------------------------------------------------
# Pass 1: conv matmul (M-tiled, K-reduction into f32 scratch) + per-tile
# per-channel sum / sum-of-squares. Conv intermediate is emitted in bf16.
# ---------------------------------------------------------------------------
def _conv_stats_kernel(p_ref, w_ref, conv_ref, stats_ref, acc_ref, *,
                       tk, weight_resident):
    k = pl.program_id(1)

    @pl.when(k == 0)
    def _init():
        acc_ref[...] = jnp.zeros_like(acc_ref)

    if weight_resident:
        # Full weight is resident in VMEM (constant block index); slice the
        # current K chunk in-kernel.
        koff = pl.multiple_of(k * tk, 128)
        w_blk = w_ref[pl.ds(koff, tk), :]
    else:
        w_blk = w_ref[...]

    # MXU matmul, bf16 inputs, f32 accumulation in the scratch accumulator.
    acc_ref[...] += jnp.dot(p_ref[...], w_blk,
                            preferred_element_type=jnp.float32)

    @pl.when(k == pl.num_programs(1) - 1)
    def _finalize():
        acc = acc_ref[...]                                      # [TM, Cp] f32
        # Stats are taken from the f32 accumulator (before the bf16 cast).
        stats_ref[...] = jnp.zeros_like(stats_ref)
        stats_ref[0:1, :] = jnp.sum(acc, axis=0, keepdims=True)
        stats_ref[1:2, :] = jnp.sum(acc * acc, axis=0, keepdims=True)
        conv_ref[...] = acc.astype(conv_ref.dtype)


# ---------------------------------------------------------------------------
# Pass 2: per-channel affine (folded BN) + LeakyReLU, M-tiled, elementwise.
# ---------------------------------------------------------------------------
def _affine_lrelu_kernel(conv_ref, scale_ref, shift_ref, o_ref):
    y = conv_ref[...].astype(jnp.float32) * scale_ref[...] + shift_ref[...]
    o_ref[...] = jnp.where(y >= 0, y, NEG_SLOPE * y)


def _im2col(x_nchw, k, s, p):
    """x: [N, C, H, W] -> patches [N*OH*OW, C*k*k] (torch weight layout)."""
    N, C, H, W = x_nchw.shape
    xp = jnp.pad(x_nchw, ((0, 0), (0, 0), (p, p), (p, p)))
    OH = (H + 2 * p - k) // s + 1
    OW = (W + 2 * p - k) // s + 1
    slabs = []
    for kh in range(k):
        for kw in range(k):
            slabs.append(xp[:, :, kh:kh + s * OH:s, kw:kw + s * OW:s])
    arr = jnp.stack(slabs, axis=0)                     # [k*k, N, C, OH, OW]
    arr = jnp.transpose(arr, (1, 3, 4, 2, 0))          # [N, OH, OW, C, k*k]
    return arr.reshape(N * OH * OW, C * k * k), OH, OW


def encoder_block_forward(x_nchw, w, b, gamma, beta, *, kernel_size=4,
                          stride=2, padding=1, use_norm=True,
                          matmul_dtype=jnp.bfloat16):
    """w: [Cout, Cin, k, k] (torch layout), b/gamma/beta: [Cout]."""
    N = x_nchw.shape[0]
    cout = w.shape[0]
    cout_pad = _round_up(cout, 128)          # lane-dense blocks, full MXU width

    # bf16 before im2col: halves the HBM bytes of the materialized patch slab.
    patches, OH, OW = _im2col(x_nchw.astype(matmul_dtype), kernel_size, stride,
                              padding)
    M, Kdim = patches.shape

    # ---- tile sizes ------------------------------------------------------
    TK = min(_round_up(Kdim, 128), 512)       # 128-aligned contraction chunk
    K_pad = _round_up(Kdim, TK)
    n_k = K_pad // TK

    TM = min(512, _round_up(M, 16))           # rows per tile (bf16 sublane ok)
    if TM >= M and M >= 32:
        # Force n_m >= 2 so the "parallel" M axis shards across v7x's 2 TCs.
        TM = _round_up((M + 1) // 2, 16)
    M_pad = _round_up(M, TM)
    n_m = M_pad // TM

    # ---- operands (zero-pad so padded rows/cols/channels are exact zeros
    # and contribute nothing to the conv or to the BN statistics) -----------
    p = patches
    if (M_pad != M) or (K_pad != Kdim):
        p = jnp.pad(p, ((0, M_pad - M), (0, K_pad - Kdim)))
    w_mat = w.reshape(cout, Kdim).T.astype(matmul_dtype)          # [Kdim, Cout]
    w_mat = jnp.pad(w_mat, ((0, K_pad - Kdim), (0, cout_pad - cout)))

    weight_resident = (K_pad * cout_pad * 2) <= (8 * 1024 * 1024)
    if weight_resident:
        w_spec = pl.BlockSpec((K_pad, cout_pad), lambda i, k: (0, 0))
        w_vmem = 2 * K_pad * cout_pad * 2
    else:
        w_spec = pl.BlockSpec((TK, cout_pad), lambda i, k: (k, 0))
        w_vmem = 2 * TK * cout_pad * 2

    # Explicit VMEM budget for the tile plan (double-buffered inputs/outputs +
    # f32 accumulator), clamped to [32 MiB, 64 MiB] so it stays legal on v7x.
    est1 = (2 * TM * TK * 2 + w_vmem + 2 * TM * cout_pad * 2
            + 2 * 8 * cout_pad * 4 + TM * cout_pad * 4)
    vmem_limit = int(max(32 << 20, min(64 << 20, 2 * est1)))

    # ---- pass 1: conv + per-tile stats -----------------------------------
    conv, stats = pl.pallas_call(
        functools.partial(_conv_stats_kernel, tk=TK,
                          weight_resident=weight_resident),
        out_shape=(jax.ShapeDtypeStruct((M_pad, cout_pad), matmul_dtype),
                   jax.ShapeDtypeStruct((n_m * 8, cout_pad), jnp.float32)),
        grid_spec=pltpu.PrefetchScalarGridSpec(
            num_scalar_prefetch=0,
            grid=(n_m, n_k),
            in_specs=[pl.BlockSpec((TM, TK), lambda i, k: (i, k)),
                      w_spec],
            out_specs=[pl.BlockSpec((TM, cout_pad), lambda i, k: (i, 0)),
                       pl.BlockSpec((8, cout_pad), lambda i, k: (i, 0))],
            scratch_shapes=[pltpu.VMEM((TM, cout_pad), jnp.float32)]),
        compiler_params=pltpu.CompilerParams(
            dimension_semantics=("parallel", "arbitrary"),
            vmem_limit_bytes=vmem_limit),
    )(p, w_mat)

    # ---- tiny cross-tile reduction + fold of BN affine (wrapper side) -----
    if use_norm:
        st = stats.reshape(n_m, 8, cout_pad)
        total_sum = jnp.sum(st[:, 0, :], axis=0)
        total_ssq = jnp.sum(st[:, 1, :], axis=0)
        mean = total_sum / M                                   # true M, not M_pad
        # NOTE: E[x^2] - mean^2 in f32; clamped at 0 to guard cancellation.
        var = jnp.maximum(total_ssq / M - mean * mean, 0.0)    # biased (train)
        inv = jax.lax.rsqrt(var + EPS)
        gamma_p = jnp.pad(gamma.astype(jnp.float32), (0, cout_pad - cout))
        beta_p = jnp.pad(beta.astype(jnp.float32), (0, cout_pad - cout))
        scale = gamma_p * inv
        shift = beta_p - mean * scale
        # conv bias intentionally dropped: cancelled by the mean subtraction.
    else:
        scale = jnp.ones((cout_pad,), jnp.float32)
        shift = jnp.pad(b.astype(jnp.float32), (0, cout_pad - cout))

    # ---- pass 2: normalize (folded) + LeakyReLU ---------------------------
    # NOTE: output kept f32 (module contract); bf16 conv intermediate means
    # the normalization is applied to bf16-quantized conv values.
    out = pl.pallas_call(
        _affine_lrelu_kernel,
        out_shape=jax.ShapeDtypeStruct((M_pad, cout_pad), jnp.float32),
        grid_spec=pltpu.PrefetchScalarGridSpec(
            num_scalar_prefetch=0,
            grid=(n_m,),
            in_specs=[pl.BlockSpec((TM, cout_pad), lambda i: (i, 0)),
                      pl.BlockSpec((1, cout_pad), lambda i: (0, 0)),
                      pl.BlockSpec((1, cout_pad), lambda i: (0, 0))],
            out_specs=pl.BlockSpec((TM, cout_pad), lambda i: (i, 0))),
        compiler_params=pltpu.CompilerParams(
            dimension_semantics=("parallel",),
            vmem_limit_bytes=vmem_limit),
    )(conv, scale.reshape(1, cout_pad), shift.reshape(1, cout_pad))

    # [M_pad, Cout_pad] -> [M, Cout] -> [N, OH, OW, Cout] -> NCHW
    # TODO(synk): keep NHWC if the downstream consumer allows (saves a full
    # activation read+write outside the kernel).
    out = out[:M, :cout].reshape(N, OH, OW, cout)
    return jnp.transpose(out, (0, 3, 1, 2))


if __name__ == "__main__":
    # Module defaults: in_channels=3, out_channels=64, k=4, s=2, p=1, use_norm.
    N, CIN, H, W = 2, 3, 16, 16
    COUT, K, S, P = 64, 4, 2, 1

    key = jax.random.PRNGKey(0)
    kx, kw, kb = jax.random.split(key, 3)
    x = jax.random.normal(kx, (N, CIN, H, W), dtype=jnp.float32)
    fan_in = CIN * K * K
    bound = 1.0 / (fan_in ** 0.5)
    w = jax.random.uniform(kw, (COUT, CIN, K, K), jnp.float32, -bound, bound)
    b = jax.random.uniform(kb, (COUT,), jnp.float32, -bound, bound)
    gamma = jnp.ones((COUT,), jnp.float32)   # BatchNorm2d default weight
    beta = jnp.zeros((COUT,), jnp.float32)   # BatchNorm2d default bias

    fwd = jax.jit(functools.partial(encoder_block_forward, kernel_size=K,
                                    stride=S, padding=P, use_norm=True))
    y = fwd(x, w, b, gamma, beta)
    jax.block_until_ready(y)
    assert y.shape == (N, COUT, H // 2, W // 2), y.shape
    print("KERNEL_OK")
</pallas_src>

<mosaic_0001>
module attributes {stable_mosaic.version = 11 : i64} {
  func.func @_conv_stats_kernel(%arg0: i32, %arg1: i32, %arg2: memref<64x128xbf16, #tpu.memory_space<vmem>>, %arg3: memref<128x128xbf16, #tpu.memory_space<vmem>>, %arg4: memref<64x128xbf16, #tpu.memory_space<vmem>>, %arg5: memref<8x128xf32, #tpu.memory_space<vmem>>, %arg6: memref<64x128xf32, #tpu.memory_space<vmem>>) attributes {dimension_semantics = [#tpu.dimension_semantics<parallel>, #tpu.dimension_semantics<arbitrary>], iteration_bounds = array<i64: 2, 1>, scalar_prefetch = 0 : i64, scratch_operands = 1 : i64, tpu.core_type = #tpu.core_type<tc>, window_params = [{transform_indices = @transform_0, window_bounds = array<i64: 64, 128>}, {pipeline_mode = #tpu.pipeline_mode<synchronous>, transform_indices = @transform_1, window_bounds = array<i64: 128, 128>}, {transform_indices = @transform_2, window_bounds = array<i64: 64, 128>}, {transform_indices = @transform_3, window_bounds = array<i64: 8, 128>}]} {
    %c0_i32 = arith.constant 0 : i32
    %0 = arith.cmpi eq, %arg1, %c0_i32 : i32
    %1 = arith.extui %0 : i1 to i32
    %c0_i32_0 = arith.constant 0 : i32
    %2 = arith.cmpi ne, %1, %c0_i32_0 : i32
    scf.if %2 {
      %cst_9 = arith.constant 0.000000e+00 : f32
      %15 = vector.broadcast %cst_9 : f32 to vector<64x128xf32>
      %c0_10 = arith.constant 0 : index
      %c0_11 = arith.constant 0 : index
      %16 = vector.load %arg6[%c0_10, %c0_11] : memref<64x128xf32, #tpu.memory_space<vmem>>, vector<64x128xf32>
      tpu.vector_store %arg6[%c0_10, %c0_11], %15 {strides = array<i32>} : memref<64x128xf32, #tpu.memory_space<vmem>>, vector<64x128xf32>,
    } else {
    }
    %c128_i32 = arith.constant 128 : i32
    %3 = arith.muli %arg1, %c128_i32 : i32
    %4 = tpu.assume_multiple %3, 128 : i32
    %5 = arith.index_cast %4 : i32 to index
    %c0 = arith.constant 0 : index
    %6 = vector.load %arg3[%5, %c0] : memref<128x128xbf16, #tpu.memory_space<vmem>>, vector<128x128xbf16>
    %c0_1 = arith.constant 0 : index
    %c0_2 = arith.constant 0 : index
    %7 = vector.load %arg6[%c0_1, %c0_2] : memref<64x128xf32, #tpu.memory_space<vmem>>, vector<64x128xf32>
    %c0_3 = arith.constant 0 : index
    %c0_4 = arith.constant 0 : index
    %8 = vector.load %arg2[%c0_3, %c0_4] : memref<64x128xbf16, #tpu.memory_space<vmem>>, vector<64x128xbf16>
    %cst = arith.constant dense<0.000000e+00> : vector<64x128xf32>
    %9 = tpu.matmul %8, %6, %cst {dimension_numbers = #tpu.dot_dimension_numbers<[1], [0], [0], [1], [0, 0, 1, 1], [], []>} : vector<64x128xbf16>, vector<128x128xbf16>, vector<64x128xf32> -> vector<64x128xf32>
    %10 = arith.addf %7, %9 : vector<64x128xf32>
    %c0_5 = arith.constant 0 : index
    %c0_6 = arith.constant 0 : index
    %11 = vector.load %arg6[%c0_5, %c0_6] : memref<64x128xf32, #tpu.memory_space<vmem>>, vector<64x128xf32>
    tpu.vector_store %arg6[%c0_5, %c0_6], %10 {strides = array<i32>} : memref<64x128xf32, #tpu.memory_space<vmem>>, vector<64x128xf32>,
    %c0_i32_7 = arith.constant 0 : i32
    %12 = arith.cmpi eq, %arg1, %c0_i32_7 : i32
    %13 = arith.extui %12 : i1 to i32
    %c0_i32_8 = arith.constant 0 : i32
    %14 = arith.cmpi ne, %13, %c0_i32_8 : i32
    scf.if %14 {
      %c0_9 = arith.constant 0 : index
      %c0_10 = arith.constant 0 : index
      %15 = vector.load %arg6[%c0_9, %c0_10] : memref<64x128xf32, #tpu.memory_space<vmem>>, vector<64x128xf32>
      %cst_11 = arith.constant 0.000000e+00 : f32
      %16 = vector.broadcast %cst_11 : f32 to vector<8x128xf32>
      %c0_12 = arith.constant 0 : index
      %c0_13 = arith.constant 0 : index
      %17 = vector.load %arg5[%c0_12, %c0_13] : memref<8x128xf32, #tpu.memory_space<vmem>>, vector<8x128xf32>
      tpu.vector_store %arg5[%c0_12, %c0_13], %16 {strides = array<i32>} : memref<8x128xf32, #tpu.memory_space<vmem>>, vector<8x128xf32>,
      %cst_14 = arith.constant dense<0.000000e+00> : vector<128xf32>
      %18 = vector.multi_reduction <add>, %15, %cst_14 [0] : vector<64x128xf32> to vector<128xf32>
      %19 = vector.shape_cast %18 : vector<128xf32> to vector<1x128xf32>
      %c0_15 = arith.constant 0 : index
      %c0_16 = arith.constant 0 : index
      %20 = vector.load %arg5[%c0_15, %c0_16] : memref<8x128xf32, #tpu.memory_space<vmem>>, vector<1x128xf32>
      tpu.vector_store %arg5[%c0_15, %c0_16], %19 {strides = array<i32>} : memref<8x128xf32, #tpu.memory_space<vmem>>, vector<1x128xf32>,
      %21 = arith.mulf %15, %15 : vector<64x128xf32>
      %cst_17 = arith.constant dense<0.000000e+00> : vector<128xf32>
      %22 = vector.multi_reduction <add>, %21, %cst_17 [0] : vector<64x128xf32> to vector<128xf32>
      %23 = vector.shape_cast %22 : vector<128xf32> to vector<1x128xf32>
      %c1 = arith.constant 1 : index
      %c0_18 = arith.constant 0 : index
      %24 = vector.load %arg5[%c1, %c0_18] : memref<8x128xf32, #tpu.memory_space<vmem>>, vector<1x128xf32>
      tpu.vector_store %arg5[%c1, %c0_18], %23 {strides = array<i32>} : memref<8x128xf32, #tpu.memory_space<vmem>>, vector<1x128xf32>,
      %25 = arith.truncf %15 : vector<64x128xf32> to vector<64x128xbf16>
      %c0_19 = arith.constant 0 : index
      %c0_20 = arith.constant 0 : index
      %26 = vector.load %arg4[%c0_19, %c0_20] : memref<64x128xbf16, #tpu.memory_space<vmem>>, vector<64x128xbf16>
      tpu.vector_store %arg4[%c0_19, %c0_20], %25 {strides = array<i32>} : memref<64x128xbf16, #tpu.memory_space<vmem>>, vector<64x128xbf16>,
    } else {
    }
    return
  }
  func.func @transform_0(%arg0: i32, %arg1: i32) -> (i32, i32) {
    %c0_i32 = arith.constant 0 : i32
    return %arg0, %arg1 : i32, i32
  }
  func.func @transform_1(%arg0: i32, %arg1: i32) -> (i32, i32) {
    %c0_i32 = arith.constant 0 : i32
    %c0_i32_0 = arith.constant 0 : i32
    %c0_i32_1 = arith.constant 0 : i32
    return %c0_i32, %c0_i32_0 : i32, i32
  }
  func.func @transform_2(%arg0: i32, %arg1: i32) -> (i32, i32) {
    %c0_i32 = arith.constant 0 : i32
    %c0_i32_0 = arith.constant 0 : i32
    return %arg0, %c0_i32 : i32, i32
  }
  func.func @transform_3(%arg0: i32, %arg1: i32) -> (i32, i32) {
    %c0_i32 = arith.constant 0 : i32
    %c0_i32_0 = arith.constant 0 : i32
    return %arg0, %c0_i32 : i32, i32
  }
}

module attributes {stable_mosaic.version = 11 : i64} {
  func.func @_affine_lrelu_kernel(%arg0: i32, %arg1: memref<64x128xbf16, #tpu.memory_space<vmem>>, %arg2: memref<1x128xf32, #tpu.memory_space<vmem>>, %arg3: memref<1x128xf32, #tpu.memory_space<vmem>>, %arg4: memref<64x128xf32, #tpu.memory_space<vmem>>) attributes {dimension_semantics = [#tpu.dimension_semantics<parallel>], iteration_bounds = array<i64: 2>, scalar_prefetch = 0 : i64, scratch_operands = 0 : i64, tpu.core_type = #tpu.core_type<tc>, window_params = [{transform_indices = @transform_0, window_bounds = array<i64: 64, 128>}, {pipeline_mode = #tpu.pipeline_mode<synchronous>, transform_indices = @transform_1, window_bounds = array<i64: 1, 128>}, {pipeline_mode = #tpu.pipeline_mode<synchronous>, transform_indices = @transform_2, window_bounds = array<i64: 1, 128>}, {transform_indices = @transform_3, window_bounds = array<i64: 64, 128>}]} {
    %c0 = arith.constant 0 : index
    %c0_0 = arith.constant 0 : index
    %0 = vector.load %arg1[%c0, %c0_0] : memref<64x128xbf16, #tpu.memory_space<vmem>>, vector<64x128xbf16>
    %1 = arith.extf %0 : vector<64x128xbf16> to vector<64x128xf32>
    %c0_1 = arith.constant 0 : index
    %c0_2 = arith.constant 0 : index
    %2 = vector.load %arg2[%c0_1, %c0_2] : memref<1x128xf32, #tpu.memory_space<vmem>>, vector<1x128xf32>
    %3 = vector.broadcast %2 : vector<1x128xf32> to vector<64x128xf32>
    %4 = arith.mulf %1, %3 : vector<64x128xf32>
    %c0_3 = arith.constant 0 : index
    %c0_4 = arith.constant 0 : index
    %5 = vector.load %arg3[%c0_3, %c0_4] : memref<1x128xf32, #tpu.memory_space<vmem>>, vector<1x128xf32>
    %6 = vector.broadcast %5 : vector<1x128xf32> to vector<64x128xf32>
    %7 = arith.addf %4, %6 : vector<64x128xf32>
    %cst = arith.constant 0.000000e+00 : f32
    %8 = vector.broadcast %cst : f32 to vector<64x128xf32>
    %9 = arith.cmpf oge, %7, %8 : vector<64x128xf32>
    %cst_5 = arith.constant 2.000000e-01 : f32
    %10 = vector.broadcast %cst_5 : f32 to vector<64x128xf32>
    %11 = arith.mulf %10, %7 : vector<64x128xf32>
    %12 = arith.select %9, %7, %11 : vector<64x128xi1>, vector<64x128xf32>
    %c0_6 = arith.constant 0 : index
    %c0_7 = arith.constant 0 : index
    %13 = vector.load %arg4[%c0_6, %c0_7] : memref<64x128xf32, #tpu.memory_space<vmem>>, vector<64x128xf32>
    tpu.vector_store %arg4[%c0_6, %c0_7], %12 {strides = array<i32>} : memref<64x128xf32, #tpu.memory_space<vmem>>, vector<64x128xf32>,
    return
  }
  func.func @transform_0(%arg0: i32) -> (i32, i32) {
    %c0_i32 = arith.constant 0 : i32
    %c0_i32_0 = arith.constant 0 : i32
    return %arg0, %c0_i32 : i32, i32
  }
  func.func @transform_1(%arg0: i32) -> (i32, i32) {
    %c0_i32 = arith.constant 0 : i32
    %c0_i32_0 = arith.constant 0 : i32
    %c0_i32_1 = arith.constant 0 : i32
    return %c0_i32, %c0_i32_0 : i32, i32
  }
  func.func @transform_2(%arg0: i32) -> (i32, i32) {
    %c0_i32 = arith.constant 0 : i32
    %c0_i32_0 = arith.constant 0 : i32
    %c0_i32_1 = arith.constant 0 : i32
    return %c0_i32, %c0_i32_0 : i32, i32
  }
  func.func @transform_3(%arg0: i32) -> (i32, i32) {
    %c0_i32 = arith.constant 0 : i32
    %c0_i32_0 = arith.constant 0 : i32
    return %arg0, %c0_i32 : i32, i32
  }
}

</mosaic_0001>

<llo_original>
// kernel: encoder_block_forward.3
$region0: #{encoder_block_forward.3}
  #allocation0 [shape = 'u32[]', space=smem, size = 0x4, offset = 0x4, fixed_abs, tag = 'smem constant byte address 0x4 - core index']
  #allocation1 [shape = 'u32[144,128]{1,0:T(1,128)}', space=vmem, size = 0x12000, scoped, tag = 'internal scratch']
  %s0 = inlined_call_operand.vmem [shape: bf16[128,128], index: 0, kind: input, shape index: {}]
  %s1 = inlined_call_operand.vmem [shape: f32[1,128], index: 1, kind: input, shape index: {}]
  %s2 = inlined_call_operand.vmem [shape: f32[1,128], index: 2, kind: input, shape index: {}]
  %s3 = inlined_call_operand.hbm [shape: f32[128,128], index: 3, kind: output, shape index: {}]
  %s4 = sld [smem:[#allocation0]]
  $region45: #{encoder_block_forward.3} parent=0
    _
  %s6 = ssub.s32 1, %s4
  %s7 = scalar_select 0, %s6, %s4
  $region1: #{encoder_block_forward.3} parent=0
    #allocation2 [shape = 'u8[65536]{0}', space=vmem, size = 0x10000, scoped, tag = 'output window, operand 0']
    #allocation3 [shape = 's32[2]{0}', space=sflag, size = 0x8, scoped, tag = 'scoped memory for encoder_block_forward.3']
    %8 = vsyncpa [#allocation3], 0
    %s9 = scalar_lea.sflag [#allocation3], 1
    %10 = vsyncpa %s9, 0
    loop: start=0, step=1, limit=4
    $region2: #{encoder_block_forward.3} parent=1 // loop_pre_header
      _
    $region3: #{encoder_block_forward.3} parent=1 // loop_header
      %s12 = sphi 0, %s16
      %p13 = scmp.ge.s32.totalorder %s12, 4
      %s22 = sphi 0, %s24
      %s25 = sphi 0, %s22
      %s26 = sphi 0, %s25
      %s42 = sphi 0, %s26
      %s46 = sphi 0, %s46
      %s48 = sphi 0, %s46
      %s49 = sphi 0, %s48
      %s63 = sphi 0, %s49
      %s67 = sphi 0, %s67
      %s69 = sphi 0, %s67
      %s70 = sphi 0, %s69
      %s84 = sphi 0, %s70
      %s90 = sphi 0, %s92
      %s93 = sphi 0, %s90
      %s94 = sphi 0, %s93
      %s110 = sphi 0, %s94
    $region4: #{encoder_block_forward.3} parent=1 // loop_header_branch
      %15 = sbr.rel (%p13) target = $region8
    $region5: #{encoder_block_forward.3} parent=1 // loop_body
      %s17 = ssub.s32 %s12, 1
      %s18 = ssub.s32 %s12, 2
      %s19 = sadd.s32 %s12, 1
      %s20 = ssub.s32 %s12, %s19
      %p21 = scmp.eq.s32.totalorder %s20, 0
      %s23 = sadd.s32 %s22, 1
      %s24 = scalar_select %p21, %s22, %s23
      %p27 = pneg %p21
      %p28 = scmp.eq.s32.totalorder %s12, 1
      %p29 = por %p27, %p28
      %p30 = scmp.ne.s32.totalorder %s22, %s25
      %p31 = scmp.eq.s32.totalorder %s12, 0
      %p32 = por %p30, %p31
      %p33 = scmp.ne.s32.totalorder %s22, %s25
      %p34 = scmp.eq.s32.totalorder %s17, 1
      %p35 = por %p33, %p34
      %p36 = scmp.ne.s32.totalorder %s25, %s26
      %p37 = scmp.eq.s32.totalorder %s17, 0
      %p38 = por %p36, %p37
      %p39 = scmp.ne.s32.totalorder %s25, %s26
      %p40 = scmp.eq.s32.totalorder %s18, 1
      %p41 = por %p39, %p40
      %p43 = scmp.ne.s32.totalorder %s26, %s42
      %p44 = scmp.eq.s32.totalorder %s18, 0
      %p45 = por %p43, %p44
      %s47 = sadd.s32 %s46, 1
      %p50 = scmp.eq.s32.totalorder %s12, 1
      %p51 = scmp.ne.s32.totalorder %s46, %s48
      %p52 = scmp.eq.s32.totalorder %s12, 0
      %p53 = por %p51, %p52
      %p54 = scmp.ne.s32.totalorder %s46, %s48
      %p55 = scmp.eq.s32.totalorder %s17, 1
      %p56 = por %p54, %p55
      %p57 = scmp.ne.s32.totalorder %s48, %s49
      %p58 = scmp.eq.s32.totalorder %s17, 0
      %p59 = por %p57, %p58
      %p60 = scmp.ne.s32.totalorder %s48, %s49
      %p61 = scmp.eq.s32.totalorder %s18, 1
      %p62 = por %p60, %p61
      %p64 = scmp.ne.s32.totalorder %s49, %s63
      %p65 = scmp.eq.s32.totalorder %s18, 0
      %p66 = por %p64, %p65
      %s68 = sadd.s32 %s67, 1
      %p71 = scmp.eq.s32.totalorder %s12, 1
      %p72 = scmp.ne.s32.totalorder %s67, %s69
      %p73 = scmp.eq.s32.totalorder %s12, 0
      %p74 = por %p72, %p73
      %p75 = scmp.ne.s32.totalorder %s67, %s69
      %p76 = scmp.eq.s32.totalorder %s17, 1
      %p77 = por %p75, %p76
      %p78 = scmp.ne.s32.totalorder %s69, %s70
      %p79 = scmp.eq.s32.totalorder %s17, 0
      %p80 = por %p78, %p79
      %p81 = scmp.ne.s32.totalorder %s69, %s70
      %p82 = scmp.eq.s32.totalorder %s18, 1
      %p83 = por %p81, %p82
      %p85 = scmp.ne.s32.totalorder %s70, %s84
      %p86 = scmp.eq.s32.totalorder %s18, 0
      %p87 = por %p85, %p86
      %s88 = ssub.s32 %s12, %s19
      %p89 = scmp.eq.s32.totalorder %s88, 0
      %s91 = sadd.s32 %s90, 1
      %s92 = scalar_select %p89, %s90, %s91
      %p95 = pneg %p89
      %p96 = scmp.eq.s32.totalorder %s12, 1
      %p97 = por %p95, %p96
      %p98 = scmp.ne.s32.totalorder %s90, %s93
      %p99 = scmp.eq.s32.totalorder %s12, 0
      %p100 = por %p98, %p99
      %p101 = scmp.ne.s32.totalorder %s90, %s93
      %p102 = scmp.eq.s32.totalorder %s17, 1
      %p103 = por %p101, %p102
      %p104 = scmp.ne.s32.totalorder %s93, %s94
      %p105 = scmp.eq.s32.totalorder %s17, 0
      %p106 = por %p104, %p105
      %p107 = scmp.ne.s32.totalorder %s93, %s94
      %p108 = scmp.eq.s32.totalorder %s18, 1
      %p109 = por %p107, %p108
      %p111 = scmp.ne.s32.totalorder %s94, %s110
      %p112 = scmp.eq.s32.totalorder %s18, 0
      %p113 = por %p111, %p112
      %p114 = scmp.le.s32.totalorder 1, %s12
      %p115 = scmp.lt.s32.totalorder %s12, 3
      %p116 = pnand %p114, %p115
      %p117 = pneg %p116
      // Predicated region
      $region9: #{encoder_block_forward.3} parent=5 // pred_check
        _
      $region10: #{encoder_block_forward.3} parent=5 // pred_check_branch
        %119 = sbr.rel (%p116) target = $region12
      $region11: #{encoder_block_forward.3} parent=5 // pred_region
        %s120 = ssub.s32 %s12, 1
        // Predicated region
        $region13: #{encoder_block_forward.3} parent=11 // pred_check
          %p121 = pneg %p59
        $region14: #{encoder_block_forward.3} parent=11 // pred_check_branch
          %123 = sbr.rel (%p121) target = $region16
        $region15: #{encoder_block_forward.3} parent=11 // pred_region
          _
        $region16: #{encoder_block_forward.3} parent=11 // pred_fallthru
          _
        // Predicated region
        $region17: #{encoder_block_forward.3} parent=11 // pred_check
          %p124 = pneg %p80
        $region18: #{encoder_block_forward.3} parent=11 // pred_check_branch
          %126 = sbr.rel (%p124) target = $region20
        $region19: #{encoder_block_forward.3} parent=11 // pred_region
          _
        $region20: #{encoder_block_forward.3} parent=11 // pred_fallthru
          _
      $region12: #{encoder_block_forward.3} parent=5 // pred_fallthru
        _
      %p127 = scmp.lt.s32.totalorder %s12, 2
      // Predicated region
      $region21: #{encoder_block_forward.3} parent=5 // pred_check
        %p128 = pneg %p127
      $region22: #{encoder_block_forward.3} parent=5 // pred_check_branch
        %130 = sbr.rel (%p128) target = $region24
      $region23: #{encoder_block_forward.3} parent=5 // pred_region
        // Predicated region
        $region25: #{encoder_block_forward.3} parent=23 // pred_check
          %p131 = pneg %p32
        $region26: #{encoder_block_forward.3} parent=23 // pred_check_branch
          %133 = sbr.rel (%p131) target = $region28
        $region27: #{encoder_block_forward.3} parent=23 // pred_region
          %s134 = smul.u32 8, %s12
          %p135 = scmp.lt.s32.totalorder %s134, 15
          %s136 = scalar_select %p135, %s134, 15
          %s137 = smul.addr %s136, 4
          %s138 = scalar_lea.vmem %s0, %s137
          %s139 = smul.u32 8, %s12
        $region28: #{encoder_block_forward.3} parent=23 // pred_fallthru
          _
      $region24: #{encoder_block_forward.3} parent=5 // pred_fallthru
        _
      %p140 = scmp.le.s32.totalorder 1, %s12
      %p141 = scmp.lt.s32.totalorder %s12, 3
      %p142 = pnand %p140, %p141
      %p143 = pneg %p142
      // Predicated region
      $region29: #{encoder_block_forward.3} parent=5 // pred_check
        _
      $region30: #{encoder_block_forward.3} parent=5 // pred_check_branch
        %145 = sbr.rel (%p142) target = $region32
      $region31: #{encoder_block_forward.3} parent=5 // pred_region
        %s146 = ssub.s32 %s12, 1
        %s147 = smul.u32 8, %s17
        %p148 = scmp.lt.s32.totalorder %s147, 15
        %s149 = scalar_select %p148, %s147, 15
        %s150 = smul.addr %s149, 4
        %s151 = scalar_lea.vmem %s0, %s150
        %p152 = pneg %p38
        %p153 = pneg %p35
        %p154 = pneg %p59
        %p155 = pneg %p56
        %p156 = pneg %p80
        %p157 = pneg %p77
        %p158 = pneg %p106
        %p159 = pneg %p103
        %s160 = sand.u32 %s93, 1
        %s161 = scalar_lea.sflag [#allocation3], %s160
        %s162 = sand.u32 %s93, 1
        %s163 = smul.addr %s162, 64
        %s164 = scalar_lea.vmem [#allocation2], %s163
        %s165 = smul.u32 8, %s17
        %p166 = scmp.lt.s32.totalorder %s165, 15
        %s167 = scalar_select %p166, %s165, 15
        %s168 = smul.addr %s167, 4
        %s169 = scalar_lea.vmem %s0, %s168
        %s170 = smul.u32 8, %s17
        %s171 = smul.u32 8, %s17
        %v172 = vld [vmem:[%s169] sm:$0xf]
        %v173 = vld [vmem:[%s169 + $0x4] sm:$0xf]
        %v174 = vld [vmem:[%s169 + $0x8] sm:$0xf]
        %v175 = vld [vmem:[%s169 + $0xc] sm:$0xf]
        %v176 = vld [vmem:[%s169 + $0x10] sm:$0xf]
        %v177 = vld [vmem:[%s169 + $0x14] sm:$0xf]
        %v178 = vld [vmem:[%s169 + $0x18] sm:$0xf]
        %v179 = vld [vmem:[%s169 + $0x1c] sm:$0xf]
        %v180 = vunpack.c.l.bf16 %v172
        %v181 = vunpack.c.l.bf16 %v173
        %v182 = vunpack.c.l.bf16 %v174
        %v183 = vunpack.c.l.bf16 %v175
        %v184 = vunpack.c.l.bf16 %v176
        %v185 = vunpack.c.l.bf16 %v177
        %v186 = vunpack.c.l.bf16 %v178
        %v187 = vunpack.c.l.bf16 %v179
        %v188 = vld [vmem:[%s1] sm:$0x1]
        %v190 = vlaneseq
        %v191 = vshrl.u32 %v190, 7
        %v192 = vsub.s32 0, %v191
        %v193 = vrot.slane %v188, %v192
        %v195 = vmul.f32 %v180, %v193
        %v196 = vmul.f32 %v181, %v193
        %v197 = vmul.f32 %v182, %v193
        %v198 = vmul.f32 %v183, %v193
        %v199 = vmul.f32 %v184, %v193
        %v200 = vmul.f32 %v185, %v193
        %v201 = vmul.f32 %v186, %v193
        %v202 = vmul.f32 %v187, %v193
        %v203 = vld [vmem:[%s2] sm:$0x1]
        %v205 = vlaneseq
        %v206 = vshrl.u32 %v205, 7
        %v207 = vsub.s32 0, %v206
        %v208 = vrot.slane %v203, %v207
        %v210 = vadd.f32 %v195, %v208
        %v211 = vadd.f32 %v196, %v208
        %v212 = vadd.f32 %v197, %v208
        %v213 = vadd.f32 %v198, %v208
        %v214 = vadd.f32 %v199, %v208
        %v215 = vadd.f32 %v200, %v208
        %v216 = vadd.f32 %v201, %v208
        %v217 = vadd.f32 %v202, %v208
        %vm218 = vcmp.ge.f32.partialorder %v210, 0.0
        %vm219 = vcmp.ge.f32.partialorder %v211, 0.0
        %vm220 = vcmp.ge.f32.partialorder %v212, 0.0
        %vm221 = vcmp.ge.f32.partialorder %v213, 0.0
        %vm222 = vcmp.ge.f32.partialorder %v214, 0.0
        %vm223 = vcmp.ge.f32.partialorder %v215, 0.0
        %vm224 = vcmp.ge.f32.partialorder %v216, 0.0
        %vm225 = vcmp.ge.f32.partialorder %v217, 0.0
        %v226 = vmul.f32 %v210, 0.2
        %v227 = vmul.f32 %v211, 0.2
        %v228 = vmul.f32 %v212, 0.2
        %v229 = vmul.f32 %v213, 0.2
        %v230 = vmul.f32 %v214, 0.2
        %v231 = vmul.f32 %v215, 0.2
        %v232 = vmul.f32 %v216, 0.2
        %v233 = vmul.f32 %v217, 0.2
        %v234 = vsel %vm218, %v210, %v226
        %v235 = vsel %vm219, %v211, %v227
        %v236 = vsel %vm220, %v212, %v228
        %v237 = vsel %vm221, %v213, %v229
        %v238 = vsel %vm222, %v214, %v230
        %v239 = vsel %vm223, %v215, %v231
        %v240 = vsel %vm224, %v216, %v232
        %v241 = vsel %vm225, %v217, %v233
        %242 = vst [vmem:[%s164] sm:$0xff] %v234
        %243 = vst [vmem:[%s164 + $0x8] sm:$0xff] %v235
        %244 = vst [vmem:[%s164 + $0x10] sm:$0xff] %v236
        %245 = vst [vmem:[%s164 + $0x18] sm:$0xff] %v237
        %246 = vst [vmem:[%s164 + $0x20] sm:$0xff] %v238
        %247 = vst [vmem:[%s164 + $0x28] sm:$0xff] %v239
        %248 = vst [vmem:[%s164 + $0x30] sm:$0xff] %v240
        %249 = vst [vmem:[%s164 + $0x38] sm:$0xff] %v241
        %s250 = sand.u32 %s93, 1
        %s251 = scalar_lea.sflag [#allocation3], %s250
        %s252 = sand.u32 %s93, 1
        %s253 = smul.addr %s252, 64
        %s254 = scalar_lea.vmem [#allocation2], %s253
        // Predicated region
        $region33: #{encoder_block_forward.3} parent=31 // pred_check
          %p255 = pneg %p103
        $region34: #{encoder_block_forward.3} parent=31 // pred_check_branch
          %257 = sbr.rel (%p255) target = $region36
        $region35: #{encoder_block_forward.3} parent=31 // pred_region
          %s258 = smul.u32 8, %s17
          %s260 = ssub.s32 1024, 1024
          %261 = vsyncadd %s251, %s260
          %s262 = smul.addr %s258, 128
          %s263 = scalar_lea.hbm %s3, %s262
          %s264 = sshll.u32 %s254, 4
          %s265 = int_to_ptr.vmem [resolvable:$true] %s264
          %270 = dma.vmem_to_hbm [thread:$0]  %s265, 1024, %s263, %s251, 128, 128, 8
        $region36: #{encoder_block_forward.3} parent=31 // pred_fallthru
          _
      $region32: #{encoder_block_forward.3} parent=5 // pred_fallthru
        _
      %p271 = scmp.le.s32.totalorder 2, %s12
      // Predicated region
      $region37: #{encoder_block_forward.3} parent=5 // pred_check
        %p272 = pneg %p271
      $region38: #{encoder_block_forward.3} parent=5 // pred_check_branch
        %274 = sbr.rel (%p272) target = $region40
      $region39: #{encoder_block_forward.3} parent=5 // pred_region
        %s275 = ssub.s32 %s12, 2
        // Predicated region
        $region41: #{encoder_block_forward.3} parent=39 // pred_check
          %p276 = pneg %p109
        $region42: #{encoder_block_forward.3} parent=39 // pred_check_branch
          %278 = sbr.rel (%p276) target = $region44
        $region43: #{encoder_block_forward.3} parent=39 // pred_region
          %s279 = sand.u32 %s94, 1
          %s280 = scalar_lea.sflag [#allocation3], %s279
          %s281 = sand.u32 %s94, 1
          %s282 = smul.addr %s281, 64
          %s283 = scalar_lea.vmem [#allocation2], %s282
          %284 = dma.done %s280, 1024
        $region44: #{encoder_block_forward.3} parent=39 // pred_fallthru
          _
      $region40: #{encoder_block_forward.3} parent=5 // pred_fallthru
        _
    $region6: #{encoder_block_forward.3} parent=1 // loop_footer
      %s16 = sadd.s32 1, %s12
    $region7: #{encoder_block_forward.3} parent=1 // loop_footer_branch
      %11 = sbr.rel target = $region3
    $region8: #{encoder_block_forward.3} parent=1 // loop_exit
      _
    %285 = vsyncpa [#allocation3], 1
    %s286 = scalar_lea.sflag [#allocation3], 1
    %287 = vsyncpa %s286, 1

// kernel: encoder_block_forward.2
$region0: #{encoder_block_forward.2}
  #allocation0 [shape = 'u32[]', space=smem, size = 0x4, offset = 0x4, fixed_abs, tag = 'smem constant byte address 0x4 - core index']
  #allocation1 [shape = 'u32[144,128]{1,0:T(1,128)}', space=vmem, size = 0x12000, scoped, tag = 'internal scratch']
  #allocation2 [shape = 'f32[64,128]{1,0:T(8,128)}', space=vmem, size = 0x8000, scoped, tag = 'scratch operand']
  %s0 = inlined_call_operand.vmem [shape: bf16[128,128], index: 0, kind: input, shape index: {}]
  %s1 = inlined_call_operand.vmem [shape: bf16[128,128], index: 1, kind: input, shape index: {}]
  %s2 = inlined_call_operand.vmem [shape: bf16[128,128], index: 2, kind: output, shape index: {0}]
  %s3 = inlined_call_operand.vmem [shape: f32[16,128], index: 3, kind: output, shape index: {1}]
  %4 = xla_tuple %s2, %s3
  %s5 = sld [smem:[#allocation0]]
  $region57: #{encoder_block_forward.2} parent=0
    _
  %s7 = ssub.s32 1, %s5
  %s8 = scalar_select 0, %s7, %s5
  loop: start=0, step=1, limit=4
  $region2: #{encoder_block_forward.2} parent=0 // loop_pre_header
    _
  $region3: #{encoder_block_forward.2} parent=0 // loop_header
    %s10 = sphi 0, %s14
    %p11 = scmp.ge.s32.totalorder %s10, 4
    %s17 = sphi 0, %s29
    %s18 = sphi 0, %s25
    %s19 = sphi 0, %s17
    %s20 = sphi 0, %s18
    %s21 = sphi 0, %s19
    %s22 = sphi 0, %s20
    %s34 = sphi 0, %s36
    %s37 = sphi 0, %s34
    %s38 = sphi 0, %s37
    %s54 = sphi 0, %s38
    %s58 = sphi 0, %s58
    %s60 = sphi 0, %s58
    %s61 = sphi 0, %s60
    %s75 = sphi 0, %s61
    %s81 = sphi 0, %s83
    %s84 = sphi 0, %s81
    %s85 = sphi 0, %s84
    %s101 = sphi 0, %s85
    %s107 = sphi 0, %s109
    %s110 = sphi 0, %s107
    %s111 = sphi 0, %s110
    %s127 = sphi 0, %s111
  $region4: #{encoder_block_forward.2} parent=0 // loop_header_branch
    %13 = sbr.rel (%p11) target = $region8
  $region5: #{encoder_block_forward.2} parent=0 // loop_body
    %s15 = ssub.s32 %s10, 1
    %s16 = ssub.s32 %s10, 2
    %s23 = sadd.s32 1, %s18
    %p24 = scmp.ge.s32.totalorder %s23, 1
    %s25 = scalar_select %p24, 0, %s23
    %s26 = sadd.s32 1, %s17
    %s27 = scalar_select %p24, %s26, %s17
    %p28 = scmp.ge.s32.totalorder %s27, 2
    %s29 = scalar_select %p28, 0, %s27
    %s30 = ssub.s32 %s17, %s29
    %s31 = ssub.s32 %s18, %s25
    %s32 = sor.u32 %s30, %s31
    %p33 = scmp.eq.s32.totalorder %s32, 0
    %s35 = sadd.s32 %s34, 1
    %s36 = scalar_select %p33, %s34, %s35
    %p39 = pneg %p33
    %p40 = scmp.eq.s32.totalorder %s10, 1
    %p41 = por %p39, %p40
    %p42 = scmp.ne.s32.totalorder %s34, %s37
    %p43 = scmp.eq.s32.totalorder %s10, 0
    %p44 = por %p42, %p43
    %p45 = scmp.ne.s32.totalorder %s34, %s37
    %p46 = scmp.eq.s32.totalorder %s15, 1
    %p47 = por %p45, %p46
    %p48 = scmp.ne.s32.totalorder %s37, %s38
    %p49 = scmp.eq.s32.totalorder %s15, 0
    %p50 = por %p48, %p49
    %p51 = scmp.ne.s32.totalorder %s37, %s38
    %p52 = scmp.eq.s32.totalorder %s16, 1
    %p53 = por %p51, %p52
    %p55 = scmp.ne.s32.totalorder %s38, %s54
    %p56 = scmp.eq.s32.totalorder %s16, 0
    %p57 = por %p55, %p56
    %s59 = sadd.s32 %s58, 1
    %p62 = scmp.eq.s32.totalorder %s10, 1
    %p63 = scmp.ne.s32.totalorder %s58, %s60
    %p64 = scmp.eq.s32.totalorder %s10, 0
    %p65 = por %p63, %p64
    %p66 = scmp.ne.s32.totalorder %s58, %s60
    %p67 = scmp.eq.s32.totalorder %s15, 1
    %p68 = por %p66, %p67
    %p69 = scmp.ne.s32.totalorder %s60, %s61
    %p70 = scmp.eq.s32.totalorder %s15, 0
    %p71 = por %p69, %p70
    %p72 = scmp.ne.s32.totalorder %s60, %s61
    %p73 = scmp.eq.s32.totalorder %s16, 1
    %p74 = por %p72, %p73
    %p76 = scmp.ne.s32.totalorder %s61, %s75
    %p77 = scmp.eq.s32.totalorder %s16, 0
    %p78 = por %p76, %p77
    %s79 = ssub.s32 %s17, %s29
    %p80 = scmp.eq.s32.totalorder %s79, 0
    %s82 = sadd.s32 %s81, 1
    %s83 = scalar_select %p80, %s81, %s82
    %p86 = pneg %p80
    %p87 = scmp.eq.s32.totalorder %s10, 1
    %p88 = por %p86, %p87
    %p89 = scmp.ne.s32.totalorder %s81, %s84
    %p90 = scmp.eq.s32.totalorder %s10, 0
    %p91 = por %p89, %p90
    %p92 = scmp.ne.s32.totalorder %s81, %s84
    %p93 = scmp.eq.s32.totalorder %s15, 1
    %p94 = por %p92, %p93
    %p95 = scmp.ne.s32.totalorder %s84, %s85
    %p96 = scmp.eq.s32.totalorder %s15, 0
    %p97 = por %p95, %p96
    %p98 = scmp.ne.s32.totalorder %s84, %s85
    %p99 = scmp.eq.s32.totalorder %s16, 1
    %p100 = por %p98, %p99
    %p102 = scmp.ne.s32.totalorder %s85, %s101
    %p103 = scmp.eq.s32.totalorder %s16, 0
    %p104 = por %p102, %p103
    %s105 = ssub.s32 %s17, %s29
    %p106 = scmp.eq.s32.totalorder %s105, 0
    %s108 = sadd.s32 %s107, 1
    %s109 = scalar_select %p106, %s107, %s108
    %p112 = pneg %p106
    %p113 = scmp.eq.s32.totalorder %s10, 1
    %p114 = por %p112, %p113
    %p115 = scmp.ne.s32.totalorder %s107, %s110
    %p116 = scmp.eq.s32.totalorder %s10, 0
    %p117 = por %p115, %p116
    %p118 = scmp.ne.s32.totalorder %s107, %s110
    %p119 = scmp.eq.s32.totalorder %s15, 1
    %p120 = por %p118, %p119
    %p121 = scmp.ne.s32.totalorder %s110, %s111
    %p122 = scmp.eq.s32.totalorder %s15, 0
    %p123 = por %p121, %p122
    %p124 = scmp.ne.s32.totalorder %s110, %s111
    %p125 = scmp.eq.s32.totalorder %s16, 1
    %p126 = por %p124, %p125
    %p128 = scmp.ne.s32.totalorder %s111, %s127
    %p129 = scmp.eq.s32.totalorder %s16, 0
    %p130 = por %p128, %p129
    %p131 = scmp.le.s32.totalorder 1, %s10
    %p132 = scmp.lt.s32.totalorder %s10, 3
    %p133 = pnand %p131, %p132
    %p134 = pneg %p133
    // Predicated region
    $region9: #{encoder_block_forward.2} parent=5 // pred_check
      _
    $region10: #{encoder_block_forward.2} parent=5 // pred_check_branch
      %136 = sbr.rel (%p133) target = $region12
    $region11: #{encoder_block_forward.2} parent=5 // pred_region
      %s137 = ssub.s32 %s10, 1
      // Predicated region
      $region13: #{encoder_block_forward.2} parent=11 // pred_check
        %p138 = pneg %p71
      $region14: #{encoder_block_forward.2} parent=11 // pred_check_branch
        %140 = sbr.rel (%p138) target = $region16
      $region15: #{encoder_block_forward.2} parent=11 // pred_region
        _
      $region16: #{encoder_block_forward.2} parent=11 // pred_fallthru
        _
    $region12: #{encoder_block_forward.2} parent=5 // pred_fallthru
      _
    %p141 = scmp.lt.s32.totalorder %s10, 2
    // Predicated region
    $region17: #{encoder_block_forward.2} parent=5 // pred_check
      %p142 = pneg %p141
    $region18: #{encoder_block_forward.2} parent=5 // pred_check_branch
      %144 = sbr.rel (%p142) target = $region20
    $region19: #{encoder_block_forward.2} parent=5 // pred_region
      // Predicated region
      $region21: #{encoder_block_forward.2} parent=19 // pred_check
        %p145 = pneg %p44
      $region22: #{encoder_block_forward.2} parent=19 // pred_check_branch
        %147 = sbr.rel (%p145) target = $region24
      $region23: #{encoder_block_forward.2} parent=19 // pred_region
        %s148 = smul.u32 8, %s17
        %p149 = scmp.lt.s32.totalorder %s148, 15
        %s150 = scalar_select %p149, %s148, 15
        %p151 = scmp.lt.s32.totalorder %s18, 0
        %s152 = scalar_select %p151, %s18, 0
        %s153 = sadd.s32 %s152, %s150
        %s154 = smul.addr %s153, 4
        %s155 = scalar_lea.vmem %s0, %s154
        %s156 = smul.u32 8, %s17
      $region24: #{encoder_block_forward.2} parent=19 // pred_fallthru
        _
    $region20: #{encoder_block_forward.2} parent=5 // pred_fallthru
      _
    %p157 = scmp.le.s32.totalorder 1, %s10
    %p158 = scmp.lt.s32.totalorder %s10, 3
    %p159 = pnand %p157, %p158
    %p160 = pneg %p159
    // Predicated region
    $region25: #{encoder_block_forward.2} parent=5 // pred_check
      _
    $region26: #{encoder_block_forward.2} parent=5 // pred_check_branch
      %162 = sbr.rel (%p159) target = $region28
    $region27: #{encoder_block_forward.2} parent=5 // pred_region
      %s163 = ssub.s32 %s10, 1
      %s164 = smul.u32 8, %s19
      %p165 = scmp.lt.s32.totalorder %s164, 15
      %s166 = scalar_select %p165, %s164, 15
      %p167 = scmp.lt.s32.totalorder %s20, 0
      %s168 = scalar_select %p167, %s20, 0
      %s169 = sadd.s32 %s168, %s166
      %s170 = smul.addr %s169, 4
      %s171 = scalar_lea.vmem %s0, %s170
      %p172 = pneg %p50
      %p173 = pneg %p47
      %p174 = pneg %p71
      %p175 = pneg %p68
      %p176 = pneg %p97
      %p177 = pneg %p94
      %s178 = smul.u32 8, %s19
      %p179 = scmp.lt.s32.totalorder %s178, 15
      %s180 = scalar_select %p179, %s178, 15
      %s181 = smul.addr %s180, 4
      %s182 = scalar_lea.vmem %s2, %s181
      %p183 = pneg %p123
      %p184 = pneg %p120
      %p185 = scmp.lt.s32.totalorder %s19, 1
      %s186 = scalar_select %p185, %s19, 1
      %s187 = smul.addr %s186, 8
      %s188 = scalar_lea.vmem %s3, %s187
      %s189 = smul.u32 8, %s19
      %p190 = scmp.lt.s32.totalorder %s189, 15
      %s191 = scalar_select %p190, %s189, 15
      %p192 = scmp.lt.s32.totalorder %s20, 0
      %s193 = scalar_select %p192, %s20, 0
      %s194 = sadd.s32 %s193, %s191
      %s195 = smul.addr %s194, 4
      %s196 = scalar_lea.vmem %s0, %s195
      %s197 = smul.u32 8, %s19
      %s198 = smul.u32 8, %s19
      %p199 = scmp.lt.s32.totalorder %s198, 15
      %s200 = scalar_select %p199, %s198, 15
      %s201 = smul.addr %s200, 4
      %s202 = scalar_lea.vmem %s2, %s201
      %s203 = smul.u32 8, %s19
      %p204 = scmp.lt.s32.totalorder %s19, 1
      %s205 = scalar_select %p204, %s19, 1
      %s206 = smul.addr %s205, 8
      %s207 = scalar_lea.vmem %s3, %s206
      %p209 = scmp.eq.s32.totalorder %s20, 0
      // Predicated region
      $region29: #{encoder_block_forward.2} parent=27 // pred_check
        %p210 = pneg %p209
      $region30: #{encoder_block_forward.2} parent=27 // pred_check_branch
        %212 = sbr.rel (%p210) target = $region32
      $region31: #{encoder_block_forward.2} parent=27 // pred_region
        %213 = vst [vmem:[#allocation2] sm:$0xff] 0.0
        %214 = vst [vmem:[#allocation2 + $0x8] sm:$0xff] 0.0
        %215 = vst [vmem:[#allocation2 + $0x10] sm:$0xff] 0.0
        %216 = vst [vmem:[#allocation2 + $0x18] sm:$0xff] 0.0
        %217 = vst [vmem:[#allocation2 + $0x20] sm:$0xff] 0.0
        %218 = vst [vmem:[#allocation2 + $0x28] sm:$0xff] 0.0
        %219 = vst [vmem:[#allocation2 + $0x30] sm:$0xff] 0.0
        %220 = vst [vmem:[#allocation2 + $0x38] sm:$0xff] 0.0
      $region32: #{encoder_block_forward.2} parent=27 // pred_fallthru
        _
      %s221 = smul.u32 %s20, 128
      %s222 = sshra.s32 %s221, 3
      %s223 = sand.u32 %s221, 7
      %s224 = smul.addr %s222, 4
      %s225 = scalar_lea.vmem %s1, %s224
      %v226 = vld [vmem:[%s225] sm:$0xf]
      %v227 = vld [vmem:[%s225 + $0x4] sm:$0xf]
      %v228 = vld [vmem:[%s225 + $0x8] sm:$0xf]
      %v229 = vld [vmem:[%s225 + $0xc] sm:$0xf]
      %v230 = vld [vmem:[%s225 + $0x10] sm:$0xf]
      %v231 = vld [vmem:[%s225 + $0x14] sm:$0xf]
      %v232 = vld [vmem:[%s225 + $0x18] sm:$0xf]
      %v233 = vld [vmem:[%s225 + $0x1c] sm:$0xf]
      %v234 = vld [vmem:[%s225 + $0x20] sm:$0xf]
      %v235 = vld [vmem:[%s225 + $0x24] sm:$0xf]
      %v236 = vld [vmem:[%s225 + $0x28] sm:$0xf]
      %v237 = vld [vmem:[%s225 + $0x2c] sm:$0xf]
      %v238 = vld [vmem:[%s225 + $0x30] sm:$0xf]
      %v239 = vld [vmem:[%s225 + $0x34] sm:$0xf]
      %v240 = vld [vmem:[%s225 + $0x38] sm:$0xf]
      %v241 = vld [vmem:[%s225 + $0x3c] sm:$0xf]
      %v242 = vld [vmem:[#allocation2] sm:$0xff]
      %v243 = vld [vmem:[#allocation2 + $0x8] sm:$0xff]
      %v244 = vld [vmem:[#allocation2 + $0x10] sm:$0xff]
      %v245 = vld [vmem:[#allocation2 + $0x18] sm:$0xff]
      %v246 = vld [vmem:[#allocation2 + $0x20] sm:$0xff]
      %v247 = vld [vmem:[#allocation2 + $0x28] sm:$0xff]
      %v248 = vld [vmem:[#allocation2 + $0x30] sm:$0xff]
      %v249 = vld [vmem:[#allocation2 + $0x38] sm:$0xff]
      %v250 = vld [vmem:[%s196] sm:$0xf]
      %v251 = vld [vmem:[%s196 + $0x4] sm:$0xf]
      %v252 = vld [vmem:[%s196 + $0x8] sm:$0xf]
      %v253 = vld [vmem:[%s196 + $0xc] sm:$0xf]
      %v254 = vld [vmem:[%s196 + $0x10] sm:$0xf]
      %v255 = vld [vmem:[%s196 + $0x14] sm:$0xf]
      %v256 = vld [vmem:[%s196 + $0x18] sm:$0xf]
      %v257 = vld [vmem:[%s196 + $0x1c] sm:$0xf]
      %v266 = vunpack.c.l.b16 %v250
      %v267 = vunpack.c.l.b16 %v251
      %v268 = vunpack.c.l.b16 %v252
      %v269 = vunpack.c.l.b16 %v253
      %v270 = vunpack.c.l.b16 %v254
      %v271 = vunpack.c.l.b16 %v255
      %v272 = vunpack.c.l.b16 %v256
      %v273 = vunpack.c.l.b16 %v257
      %v274 = vpack.c.b16 %v267, %v266
      %v275 = vpack.c.b16 %v269, %v268
      %v276 = vpack.c.b16 %v271, %v270
      %v277 = vpack.c.b16 %v273, %v272
      %v298 = vunpack.c.l.b16 %v226
      %v299 = vunpack.c.l.b16 %v227
      %v300 = vunpack.c.l.b16 %v228
      %v301 = vunpack.c.l.b16 %v229
      %v302 = vunpack.c.l.b16 %v230
      %v303 = vunpack.c.l.b16 %v231
      %v304 = vunpack.c.l.b16 %v232
      %v305 = vunpack.c.l.b16 %v233
      %v306 = vunpack.c.l.b16 %v234
      %v307 = vunpack.c.l.b16 %v235
      %v308 = vunpack.c.l.b16 %v236
      %v309 = vunpack.c.l.b16 %v237
      %v310 = vunpack.c.l.b16 %v238
      %v311 = vunpack.c.l.b16 %v239
      %v312 = vunpack.c.l.b16 %v240
      %v313 = vunpack.c.l.b16 %v241
      %v314 = vpack.c.b16 %v299, %v298
      %v315 = vpack.c.b16 %v301, %v300
      %v316 = vpack.c.b16 %v303, %v302
      %v317 = vpack.c.b16 %v305, %v304
      %v318 = vpack.c.b16 %v307, %v306
      %v319 = vpack.c.b16 %v309, %v308
      %v320 = vpack.c.b16 %v311, %v310
      %v321 = vpack.c.b16 %v313, %v312
      %330 = vmatprep.subr.bf16.mxu0 0
      %331 = vmatpush1.bf16.msra.mxu0 %v321
      %332 = vmatprep.subr.bf16.mxu0 0
      %333 = vmatpush1.bf16.msra.mxu0 %v320
      %334 = vmatprep.subr.bf16.mxu0 0
      %335 = vmatpush1.bf16.msra.mxu0 %v319
      %336 = vmatprep.subr.bf16.mxu0 0
      %337 = vmatpush1.bf16.msra.mxu0 %v318
      %338 = vmatprep.subr.bf16.mxu0 0
      %339 = vmatpush1.bf16.msra.mxu0 %v317
      %340 = vmatprep.subr.bf16.mxu0 0
      %341 = vmatpush1.bf16.msra.mxu0 %v316
      %342 = vmatprep.subr.bf16.mxu0 0
      %343 = vmatpush1.bf16.msra.mxu0 %v315
      %344 = vmatprep.subr.bf16.mxu0 0
      %345 = vmatpush1.bf16.msra.mxu0 %v314
      %346 = vmatprep.subr.bf16.mxu0 0
      %347 = vmatpush2.bf16.msra.mxu0 0
      %348 = vmatprep.subr.bf16.mxu0 0
      %349 = vmatpush2.bf16.msra.mxu0 0
      %350 = vmatprep.subr.bf16.mxu0 0
      %351 = vmatpush2.bf16.msra.mxu0 0
      %352 = vmatprep.subr.bf16.mxu0 0
      %353 = vmatpush2.bf16.msra.mxu0 0
      %354 = vmatprep.subr.bf16.mxu0 0
      %355 = vmatpush2.bf16.msra.mxu0 0
      %356 = vmatprep.subr.bf16.mxu0 0
      %357 = vmatpush2.bf16.msra.mxu0 0
      %358 = vmatprep.subr.bf16.mxu0 0
      %359 = vmatpush2.bf16.msra.mxu0 0
      %360 = vmatprep.subr.bf16.mxu0 0
      %361 = vmatpush2.bf16.msra.mxu0 0
      %362 = vmatprep.mubr.bf16.mxu0 0
      %363 = vmatmul.mubr.bf16.gmra.mxu0 %v274
      %v364 = vpop.f32.mrf.mxu0
      %v365 = vadd.f32 0.0, %v364
      %v366 = vpop.f32.mrf.mxu0
      %v367 = vpop.f32.mrf.mxu0
      %v368 = vadd.f32 0.0, %v367
      %v369 = vpop.f32.mrf.mxu0
      %370 = vmatprep.mubr.bf16.mxu0 0
      %371 = vmatmul.mubr.bf16.gmra.mxu0 %v275
      %v372 = vpop.f32.mrf.mxu0
      %v373 = vadd.f32 0.0, %v372
      %v374 = vpop.f32.mrf.mxu0
      %v375 = vpop.f32.mrf.mxu0
      %v376 = vadd.f32 0.0, %v375
      %v377 = vpop.f32.mrf.mxu0
      %378 = vmatprep.mubr.bf16.mxu0 0
      %379 = vmatmul.mubr.bf16.gmra.mxu0 %v276
      %v380 = vpop.f32.mrf.mxu0
      %v381 = vadd.f32 0.0, %v380
      %v382 = vpop.f32.mrf.mxu0
      %v383 = vpop.f32.mrf.mxu0
      %v384 = vadd.f32 0.0, %v383
      %v385 = vpop.f32.mrf.mxu0
      %386 = vmatprep.mubr.bf16.mxu0 0
      %387 = vmatmul.mubr.bf16.gmra.mxu0 %v277
      %v388 = vpop.f32.mrf.mxu0
      %v389 = vadd.f32 0.0, %v388
      %v390 = vpop.f32.mrf.mxu0
      %v391 = vpop.f32.mrf.mxu0
      %v392 = vadd.f32 0.0, %v391
      %v393 = vpop.f32.mrf.mxu0
      %394 = vdwg.mxu0
      %v395 = vadd.f32 %v242, %v365
      %v396 = vadd.f32 %v243, %v368
      %v397 = vadd.f32 %v244, %v373
      %v398 = vadd.f32 %v245, %v376
      %v399 = vadd.f32 %v246, %v381
      %v400 = vadd.f32 %v247, %v384
      %v401 = vadd.f32 %v248, %v389
      %v402 = vadd.f32 %v249, %v392
      %403 = vst [vmem:[#allocation2] sm:$0xff] %v395
      %404 = vst [vmem:[#allocation2 + $0x8] sm:$0xff] %v396
      %405 = vst [vmem:[#allocation2 + $0x10] sm:$0xff] %v397
      %406 = vst [vmem:[#allocation2 + $0x18] sm:$0xff] %v398
      %407 = vst [vmem:[#allocation2 + $0x20] sm:$0xff] %v399
      %408 = vst [vmem:[#allocation2 + $0x28] sm:$0xff] %v400
      %409 = vst [vmem:[#allocation2 + $0x30] sm:$0xff] %v401
      %410 = vst [vmem:[#allocation2 + $0x38] sm:$0xff] %v402
      // Predicated region
      $region33: #{encoder_block_forward.2} parent=27 // pred_check
        %p411 = pneg %p209
      $region34: #{encoder_block_forward.2} parent=27 // pred_check_branch
        %413 = sbr.rel (%p411) target = $region36
      $region35: #{encoder_block_forward.2} parent=27 // pred_region
        %v414 = vld [vmem:[#allocation2] sm:$0xff]
        %v415 = vld [vmem:[#allocation2 + $0x8] sm:$0xff]
        %v416 = vld [vmem:[#allocation2 + $0x10] sm:$0xff]
        %v417 = vld [vmem:[#allocation2 + $0x18] sm:$0xff]
        %v418 = vld [vmem:[#allocation2 + $0x20] sm:$0xff]
        %v419 = vld [vmem:[#allocation2 + $0x28] sm:$0xff]
        %v420 = vld [vmem:[#allocation2 + $0x30] sm:$0xff]
        %v421 = vld [vmem:[#allocation2 + $0x38] sm:$0xff]
        %422 = vst [vmem:[%s207] sm:$0xff] 0.0
        %v423 = vadd.f32 %v414, %v415
        %v424 = vadd.f32 %v423, %v416
        %v425 = vadd.f32 %v424, %v417
        %v426 = vadd.f32 %v425, %v418
        %v427 = vadd.f32 %v426, %v419
        %v428 = vadd.f32 %v427, %v420
        %v429 = vadd.f32 %v428, %v421
        %v430 = vrot.slane %v429, 4
        %v431 = vadd.f32 %v429, %v430
        %v432 = vrot.slane %v431, 2
        %v433 = vadd.f32 %v431, %v432
        %v434 = vrot.slane %v433, 1
        %v435 = vadd.f32 %v433, %v434
        %436 = vst [vmem:[%s207] sm:$0x1] %v435
        %v437 = vmul.f32 %v414, %v414
        %v438 = vmul.f32 %v415, %v415
        %v439 = vmul.f32 %v416, %v416
        %v440 = vmul.f32 %v417, %v417
        %v441 = vmul.f32 %v418, %v418
        %v442 = vmul.f32 %v419, %v419
        %v443 = vmul.f32 %v420, %v420
        %v444 = vmul.f32 %v421, %v421
        %v445 = vadd.f32 %v437, %v438
        %v446 = vadd.f32 %v445, %v439
        %v447 = vadd.f32 %v446, %v440
        %v448 = vadd.f32 %v447, %v441
        %v449 = vadd.f32 %v448, %v442
        %v450 = vadd.f32 %v449, %v443
        %v451 = vadd.f32 %v450, %v444
        %v452 = vrot.slane %v451, 4
        %v453 = vadd.f32 %v451, %v452
        %v454 = vrot.slane %v453, 2
        %v455 = vadd.f32 %v453, %v454
        %v456 = vrot.slane %v455, 1
        %v457 = vadd.f32 %v455, %v456
        %458 = vst [vmem:[%s207 + $0x1] sm:$0x1] %v457
        %v459 = vpack.c.bf16 %v415, %v414
        %v460 = vpack.c.bf16 %v417, %v416
        %v461 = vpack.c.bf16 %v419, %v418
        %v462 = vpack.c.bf16 %v421, %v420
        %v467 = vunpack.c.l.b16 %v459
        %v468 = vunpack.c.h.b16 %v459
        %v469 = vunpack.c.l.b16 %v460
        %v470 = vunpack.c.h.b16 %v460
        %v471 = vunpack.c.l.b16 %v461
        %v472 = vunpack.c.h.b16 %v461
        %v473 = vunpack.c.l.b16 %v462
        %v474 = vunpack.c.h.b16 %v462
        %v475 = vpack.c.b16 %v467, %v467
        %v476 = vpack.c.b16 %v468, %v468
        %v477 = vpack.c.b16 %v469, %v469
        %v478 = vpack.c.b16 %v470, %v470
        %v479 = vpack.c.b16 %v471, %v471
        %v480 = vpack.c.b16 %v472, %v472
        %v481 = vpack.c.b16 %v473, %v473
        %v482 = vpack.c.b16 %v474, %v474
        %491 = vst [vmem:[%s202] sm:$0xf] %v475
        %492 = vst [vmem:[%s202 + $0x4] sm:$0xf] %v476
        %493 = vst [vmem:[%s202 + $0x8] sm:$0xf] %v477
        %494 = vst [vmem:[%s202 + $0xc] sm:$0xf] %v478
        %495 = vst [vmem:[%s202 + $0x10] sm:$0xf] %v479
        %496 = vst [vmem:[%s202 + $0x14] sm:$0xf] %v480
        %497 = vst [vmem:[%s202 + $0x18] sm:$0xf] %v481
        %498 = vst [vmem:[%s202 + $0x1c] sm:$0xf] %v482
      $region36: #{encoder_block_forward.2} parent=27 // pred_fallthru
        _
      %s499 = smul.u32 8, %s19
      %p500 = scmp.lt.s32.totalorder %s499, 15
      %s501 = scalar_select %p500, %s499, 15
      %s502 = smul.addr %s501, 4
      %s503 = scalar_lea.vmem %s2, %s502
      %p504 = scmp.lt.s32.totalorder %s19, 1
      %s505 = scalar_select %p504, %s19, 1
      %s506 = smul.addr %s505, 8
      %s507 = scalar_lea.vmem %s3, %s506
      // Predicated region
      $region37: #{encoder_block_forward.2} parent=27 // pred_check
        %p508 = pneg %p94
      $region38: #{encoder_block_forward.2} parent=27 // pred_check_branch
        %510 = sbr.rel (%p508) target = $region40
      $region39: #{encoder_block_forward.2} parent=27 // pred_region
        %s511 = smul.u32 8, %s19
      $region40: #{encoder_block_forward.2} parent=27 // pred_fallthru
        _
      // Predicated region
      $region41: #{encoder_block_forward.2} parent=27 // pred_check
        %p512 = pneg %p120
      $region42: #{encoder_block_forward.2} parent=27 // pred_check_branch
        %514 = sbr.rel (%p512) target = $region44
      $region43: #{encoder_block_forward.2} parent=27 // pred_region
        _
      $region44: #{encoder_block_forward.2} parent=27 // pred_fallthru
        _
    $region28: #{encoder_block_forward.2} parent=5 // pred_fallthru
      _
    %p515 = scmp.le.s32.totalorder 2, %s10
    // Predicated region
    $region45: #{encoder_block_forward.2} parent=5 // pred_check
      %p516 = pneg %p515
    $region46: #{encoder_block_forward.2} parent=5 // pred_check_branch
      %518 = sbr.rel (%p516) target = $region48
    $region47: #{encoder_block_forward.2} parent=5 // pred_region
      %s519 = ssub.s32 %s10, 2
      // Predicated region
      $region49: #{encoder_block_forward.2} parent=47 // pred_check
        %p520 = pneg %p100
      $region50: #{encoder_block_forward.2} parent=47 // pred_check_branch
        %522 = sbr.rel (%p520) target = $region52
      $region51: #{encoder_block_forward.2} parent=47 // pred_region
        %s523 = smul.u32 8, %s21
        %p524 = scmp.lt.s32.totalorder %s523, 15
        %s525 = scalar_select %p524, %s523, 15
        %s526 = smul.addr %s525, 4
        %s527 = scalar_lea.vmem %s2, %s526
      $region52: #{encoder_block_forward.2} parent=47 // pred_fallthru
        _
      // Predicated region
      $region53: #{encoder_block_forward.2} parent=47 // pred_check
        %p528 = pneg %p126
      $region54: #{encoder_block_forward.2} parent=47 // pred_check_branch
        %530 = sbr.rel (%p528) target = $region56
      $region55: #{encoder_block_forward.2} parent=47 // pred_region
        %p531 = scmp.lt.s32.totalorder %s21, 1
        %s532 = scalar_select %p531, %s21, 1
        %s533 = smul.addr %s532, 8
        %s534 = scalar_lea.vmem %s3, %s533
      $region56: #{encoder_block_forward.2} parent=47 // pred_fallthru
        _
    $region48: #{encoder_block_forward.2} parent=5 // pred_fallthru
      _
  $region6: #{encoder_block_forward.2} parent=0 // loop_footer
    %s14 = sadd.s32 1, %s10
  $region7: #{encoder_block_forward.2} parent=0 // loop_footer_branch
    %9 = sbr.rel target = $region3
  $region8: #{encoder_block_forward.2} parent=0 // loop_exit
    _

</llo_original>
